<compile_context>
chip_gen: v5e
topology: v5e:2x2
jax: 0.10.0
libtpu: 0.0.40
codegen_flags: <defaults>
</compile_context>

<pallas_src>
import functools

import jax
import jax.numpy as jnp
from jax.experimental import pallas as pl
from jax.experimental.pallas import tpu as pltpu


def _round_up(n, m):
    return pl.cdiv(n, m) * m


def _policy_kernel(x_ref, w1_ref, b1_ref, wh_ref, bh_ref, out_ref, *, action_dim):
    # fc1 + ReLU  (hidden activations stay on-chip; never written to HBM)
    h = jnp.dot(x_ref[...], w1_ref[...], preferred_element_type=jnp.float32)
    h = jnp.maximum(h + b1_ref[...], 0.0)

    # Fused head matmul: columns [0, A) are fc_mu, [A, 2A) are fc_std,
    # the rest is zero padding (sliced off in the wrapper).
    pre = jnp.dot(h, wh_ref[...], preferred_element_type=jnp.float32) + bh_ref[...]

    mu = 2.0 * jnp.tanh(pre)
    # softplus matching torch.F.softplus (beta=1, threshold=20), overflow-safe.
    sp = jnp.where(pre > 20.0, pre, jnp.log1p(jnp.exp(jnp.minimum(pre, 20.0))))

    col = jax.lax.broadcasted_iota(jnp.int32, pre.shape, dimension=1)
    out_ref[...] = jnp.where(col < action_dim, mu, sp)


def policy_net_continuous(x, params, *, batch_tile=512):
    """Forward pass of PolicyNetContinuous.

    x: (B, state_dim) float32
    params: dict with w1 (state_dim, hidden), b1 (hidden,),
            w_mu (hidden, action_dim), b_mu (action_dim,),
            w_std (hidden, action_dim), b_std (action_dim,)
    Returns (mu, std): each (B, action_dim) float32.
    """
    B, state_dim = x.shape
    hidden_dim = params["w1"].shape[1]
    A = params["w_mu"].shape[1]

    # Lane-dense fused head: pad 2*action_dim up to a multiple of 128 lanes.
    head_pad = max(128, _round_up(2 * A, 128))

    # Batch tile: multiple of 8 sublanes, capped so tiny batches aren't over-padded.
    TB = min(batch_tile, _round_up(B, 8))
    Bp = _round_up(B, TB)
    x_p = jnp.pad(x, ((0, Bp - B), (0, 0))) if Bp != B else x

    # Pack mu/std heads into one (hidden, head_pad) weight + (1, head_pad) bias.
    w_head = jnp.zeros((hidden_dim, head_pad), jnp.float32)
    w_head = w_head.at[:, :A].set(params["w_mu"]).at[:, A:2 * A].set(params["w_std"])
    b_head = jnp.zeros((1, head_pad), jnp.float32)
    b_head = b_head.at[:, :A].set(params["b_mu"]).at[:, A:2 * A].set(params["b_std"])
    b1 = params["b1"].reshape(1, -1)

    grid = (Bp // TB,)

    # Advisory cost estimate for XLA scheduling around the custom call.
    flops = 2 * Bp * (state_dim * hidden_dim + hidden_dim * head_pad)
    bytes_accessed = 4 * (
        Bp * state_dim + Bp * head_pad                     # streamed x + output
        + state_dim * hidden_dim + hidden_dim              # fc1 weight + bias
        + hidden_dim * head_pad + head_pad                 # fused head weight + bias
    )
    transcendentals = 2 * Bp * head_pad                    # tanh + exp per head element

    out = pl.pallas_call(
        functools.partial(_policy_kernel, action_dim=A),
        out_shape=jax.ShapeDtypeStruct((Bp, head_pad), jnp.float32),
        grid=grid,
        in_specs=[
            pl.BlockSpec((TB, state_dim), lambda i: (i, 0)),          # x (streamed)
            pl.BlockSpec((state_dim, hidden_dim), lambda i: (0, 0)),  # w1 (resident)
            pl.BlockSpec((1, hidden_dim), lambda i: (0, 0)),          # b1
            pl.BlockSpec((hidden_dim, head_pad), lambda i: (0, 0)),   # fused head W
            pl.BlockSpec((1, head_pad), lambda i: (0, 0)),            # fused head b
        ],
        out_specs=pl.BlockSpec((TB, head_pad), lambda i: (i, 0)),
        compiler_params=pltpu.CompilerParams(
            dimension_semantics=("parallel",),
        ),
        cost_estimate=pl.CostEstimate(
            flops=flops,
            transcendentals=transcendentals,
            bytes_accessed=bytes_accessed,
        ),
    )(x_p, params["w1"], b1, w_head, b_head)

    mu = out[:B, :A]
    std = out[:B, A:2 * A]
    return mu, std


def init_params(key, state_dim, hidden_dim, action_dim):
    """Deterministic synthetic params (same shapes as the torch module)."""
    ks = jax.random.split(key, 6)
    # Note: torch Linear weight is (out, in); we store the transpose (in, out).
    w1 = jax.random.normal(ks[0], (state_dim, hidden_dim), jnp.float32) * 0.1
    b1 = jax.random.normal(ks[1], (hidden_dim,), jnp.float32) * 0.1
    w_mu = jax.random.normal(ks[2], (hidden_dim, action_dim), jnp.float32) * 0.1
    b_mu = jax.random.normal(ks[3], (action_dim,), jnp.float32) * 0.1
    w_std = jax.random.normal(ks[4], (hidden_dim, action_dim), jnp.float32) * 0.1
    b_std = jax.random.normal(ks[5], (action_dim,), jnp.float32) * 0.1
    return dict(w1=w1, b1=b1, w_mu=w_mu, b_mu=b_mu, w_std=w_std, b_std=b_std)


def _reference(x, p):
    h = jax.nn.relu(x @ p["w1"] + p["b1"])
    mu = 2.0 * jnp.tanh(h @ p["w_mu"] + p["b_mu"])
    std = jax.nn.softplus(h @ p["w_std"] + p["b_std"])
    return mu, std


if __name__ == "__main__":
    key = jax.random.PRNGKey(0)
    k_x, k_p = jax.random.split(key)

    batch, state_dim, hidden_dim, action_dim = 2, 16, 32, 8
    x = jax.random.normal(k_x, (batch, state_dim), jnp.float32)
    params = init_params(k_p, state_dim, hidden_dim, action_dim)

    mu, std = policy_net_continuous(x, params)
    jax.block_until_ready((mu, std))

    mu_ref, std_ref = _reference(x, params)
    assert mu.shape == (batch, action_dim) and std.shape == (batch, action_dim)
    assert jnp.allclose(mu, mu_ref, atol=1e-5, rtol=1e-5)
    assert jnp.allclose(std, std_ref, atol=1e-5, rtol=1e-5)

    # Also exercise the multi-tile path (grid > 1) to validate the batch tiling.
    big_B = 1100
    xb = jax.random.normal(k_x, (big_B, state_dim), jnp.float32)
    mu_b, std_b = policy_net_continuous(xb, params, batch_tile=512)
    jax.block_until_ready((mu_b, std_b))
    mu_br, std_br = _reference(xb, params)
    assert jnp.allclose(mu_b, mu_br, atol=1e-5, rtol=1e-5)
    assert jnp.allclose(std_b, std_br, atol=1e-5, rtol=1e-5)

    print("KERNEL_OK")
</pallas_src>

<mosaic_0001>
module attributes {stable_mosaic.version = 11 : i64} {
  func.func @_policy_kernel(%arg0: i32, %arg1: memref<8x16xf32, #tpu.memory_space<vmem>>, %arg2: memref<16x32xf32, #tpu.memory_space<vmem>>, %arg3: memref<1x32xf32, #tpu.memory_space<vmem>>, %arg4: memref<32x128xf32, #tpu.memory_space<vmem>>, %arg5: memref<1x128xf32, #tpu.memory_space<vmem>>, %arg6: memref<8x128xf32, #tpu.memory_space<vmem>>) attributes {dimension_semantics = [#tpu.dimension_semantics<parallel>], iteration_bounds = array<i64: 1>, scalar_prefetch = 0 : i64, scratch_operands = 0 : i64, tpu.core_type = #tpu.core_type<tc>, window_params = [{transform_indices = @transform_0, window_bounds = array<i64: 8, 16>}, {pipeline_mode = #tpu.pipeline_mode<synchronous>, transform_indices = @transform_1, window_bounds = array<i64: 16, 32>}, {pipeline_mode = #tpu.pipeline_mode<synchronous>, transform_indices = @transform_2, window_bounds = array<i64: 1, 32>}, {pipeline_mode = #tpu.pipeline_mode<synchronous>, transform_indices = @transform_3, window_bounds = array<i64: 32, 128>}, {pipeline_mode = #tpu.pipeline_mode<synchronous>, transform_indices = @transform_4, window_bounds = array<i64: 1, 128>}, {transform_indices = @transform_5, window_bounds = array<i64: 8, 128>}]} {
    %c0 = arith.constant 0 : index
    %c0_0 = arith.constant 0 : index
    %0 = vector.load %arg1[%c0, %c0_0] : memref<8x16xf32, #tpu.memory_space<vmem>>, vector<8x16xf32>
    %c0_1 = arith.constant 0 : index
    %c0_2 = arith.constant 0 : index
    %1 = vector.load %arg2[%c0_1, %c0_2] : memref<16x32xf32, #tpu.memory_space<vmem>>, vector<16x32xf32>
    %cst = arith.constant dense<0.000000e+00> : vector<8x32xf32>
    %2 = tpu.matmul %0, %1, %cst {dimension_numbers = #tpu.dot_dimension_numbers<[1], [0], [0], [1], [0, 0, 1, 1], [], []>} : vector<8x16xf32>, vector<16x32xf32>, vector<8x32xf32> -> vector<8x32xf32>
    %c0_3 = arith.constant 0 : index
    %c0_4 = arith.constant 0 : index
    %3 = vector.load %arg3[%c0_3, %c0_4] : memref<1x32xf32, #tpu.memory_space<vmem>>, vector<1x32xf32>
    %4 = vector.broadcast %3 : vector<1x32xf32> to vector<8x32xf32>
    %5 = arith.addf %2, %4 : vector<8x32xf32>
    %cst_5 = arith.constant 0.000000e+00 : f32
    %6 = vector.broadcast %cst_5 : f32 to vector<8x32xf32>
    %7 = arith.maximumf %5, %6 : vector<8x32xf32>
    %c0_6 = arith.constant 0 : index
    %c0_7 = arith.constant 0 : index
    %8 = vector.load %arg4[%c0_6, %c0_7] : memref<32x128xf32, #tpu.memory_space<vmem>>, vector<32x128xf32>
    %cst_8 = arith.constant dense<0.000000e+00> : vector<8x128xf32>
    %9 = tpu.matmul %7, %8, %cst_8 {dimension_numbers = #tpu.dot_dimension_numbers<[1], [0], [0], [1], [0, 0, 1, 1], [], []>} : vector<8x32xf32>, vector<32x128xf32>, vector<8x128xf32> -> vector<8x128xf32>
    %c0_9 = arith.constant 0 : index
    %c0_10 = arith.constant 0 : index
    %10 = vector.load %arg5[%c0_9, %c0_10] : memref<1x128xf32, #tpu.memory_space<vmem>>, vector<1x128xf32>
    %11 = vector.broadcast %10 : vector<1x128xf32> to vector<8x128xf32>
    %12 = arith.addf %9, %11 : vector<8x128xf32>
    %13 = math.tanh %12 : vector<8x128xf32>
    %cst_11 = arith.constant 2.000000e+00 : f32
    %14 = vector.broadcast %cst_11 : f32 to vector<8x128xf32>
    %15 = arith.mulf %14, %13 : vector<8x128xf32>
    %cst_12 = arith.constant 2.000000e+01 : f32
    %16 = vector.broadcast %cst_12 : f32 to vector<8x128xf32>
    %17 = arith.cmpf ogt, %12, %16 : vector<8x128xf32>
    %cst_13 = arith.constant 2.000000e+01 : f32
    %18 = vector.broadcast %cst_13 : f32 to vector<8x128xf32>
    %19 = arith.minimumf %12, %18 : vector<8x128xf32>
    %20 = math.exp %19 : vector<8x128xf32>
    %21 = math.log1p %20 : vector<8x128xf32>
    %22 = arith.select %17, %12, %21 : vector<8x128xi1>, vector<8x128xf32>
    %23 = tpu.iota {dimensions = array<i32: 1>} : vector<8x128xi32>
    %c8_i32 = arith.constant 8 : i32
    %24 = vector.broadcast %c8_i32 : i32 to vector<8x128xi32>
    %25 = arith.cmpi slt, %23, %24 : vector<8x128xi32>
    %26 = arith.select %25, %15, %22 : vector<8x128xi1>, vector<8x128xf32>
    %c0_14 = arith.constant 0 : index
    %c0_15 = arith.constant 0 : index
    %27 = vector.load %arg6[%c0_14, %c0_15] : memref<8x128xf32, #tpu.memory_space<vmem>>, vector<8x128xf32>
    tpu.vector_store %arg6[%c0_14, %c0_15], %26 {strides = array<i32>} : memref<8x128xf32, #tpu.memory_space<vmem>>, vector<8x128xf32>,
    return
  }
  func.func @transform_0(%arg0: i32) -> (i32, i32) {
    %c0_i32 = arith.constant 0 : i32
    %c0_i32_0 = arith.constant 0 : i32
    return %arg0, %c0_i32 : i32, i32
  }
  func.func @transform_1(%arg0: i32) -> (i32, i32) {
    %c0_i32 = arith.constant 0 : i32
    %c0_i32_0 = arith.constant 0 : i32
    %c0_i32_1 = arith.constant 0 : i32
    return %c0_i32, %c0_i32_0 : i32, i32
  }
  func.func @transform_2(%arg0: i32) -> (i32, i32) {
    %c0_i32 = arith.constant 0 : i32
    %c0_i32_0 = arith.constant 0 : i32
    %c0_i32_1 = arith.constant 0 : i32
    return %c0_i32, %c0_i32_0 : i32, i32
  }
  func.func @transform_3(%arg0: i32) -> (i32, i32) {
    %c0_i32 = arith.constant 0 : i32
    %c0_i32_0 = arith.constant 0 : i32
    %c0_i32_1 = arith.constant 0 : i32
    return %c0_i32, %c0_i32_0 : i32, i32
  }
  func.func @transform_4(%arg0: i32) -> (i32, i32) {
    %c0_i32 = arith.constant 0 : i32
    %c0_i32_0 = arith.constant 0 : i32
    %c0_i32_1 = arith.constant 0 : i32
    return %c0_i32, %c0_i32_0 : i32, i32
  }
  func.func @transform_5(%arg0: i32) -> (i32, i32) {
    %c0_i32 = arith.constant 0 : i32
    %c0_i32_0 = arith.constant 0 : i32
    return %arg0, %c0_i32 : i32, i32
  }
}

</mosaic_0001>

<llo_original>
// kernel: tpu_custom_call.1
$region0: #{tpu_custom_call.1}
  #allocation0 [shape = 'u32[]', space=smem, size = 0x4, offset = 0x4, fixed_abs, tag = 'smem constant byte address 0x4 - core index']
  #allocation1 [shape = 'u32[72,128]{1,0:T(1,128)}', space=vmem, size = 0x9000, scoped, tag = 'internal scratch']
  %s0 = inlined_call_operand.hbm [shape: f32[8,16], index: 0, kind: input, shape index: {}]
  %s1 = inlined_call_operand.hbm [shape: f32[16,32], index: 1, kind: input, shape index: {}]
  %s2 = inlined_call_operand.vmem [shape: f32[1,32], index: 2, kind: input, shape index: {}]
  %s3 = inlined_call_operand.hbm [shape: f32[32,128], index: 3, kind: input, shape index: {}]
  %s4 = inlined_call_operand.vmem [shape: f32[1,128], index: 4, kind: input, shape index: {}]
  %s5 = inlined_call_operand.hbm [shape: f32[8,128], index: 5, kind: output, shape index: {}]
  %s6 = sld [smem:[#allocation0]]
  $region42: #{tpu_custom_call.1} parent=0
    _
  %s8 = ssub.s32 1, %s6
  %s9 = scalar_select 0, %s8, %s6
  $region1: #{tpu_custom_call.1} parent=0
    #allocation2 [shape = 'u8[4096]{0}', space=vmem, size = 0x1000, scoped, tag = 'input window, operand 0, single buffered']
    #allocation3 [shape = 's32[1]{0}', space=sflag, size = 0x4, scoped, tag = 'scoped memory for tpu_custom_call.1']
    #allocation4 [shape = 's32[1]{0}', space=sflag, size = 0x4, scoped, tag = 'scoped memory for tpu_custom_call.1']
    #allocation5 [shape = 'u8[8192]{0}', space=vmem, size = 0x2000, scoped, tag = 'input window, operand 1, single buffered']
    #allocation6 [shape = 's32[1]{0}', space=sflag, size = 0x4, scoped, tag = 'scoped memory for tpu_custom_call.1']
    #allocation7 [shape = 'u8[16384]{0}', space=vmem, size = 0x4000, scoped, tag = 'input window, operand 3, single buffered']
    #allocation8 [shape = 'u8[4096]{0}', space=vmem, size = 0x1000, scoped, tag = 'output window, operand 0, single buffered']
    %10 = vsyncpa [#allocation3], 0
    %11 = vsyncpa [#allocation6], 0
    %12 = vsyncpa [#allocation4], 0
    // Predicated region
    $region2: #{tpu_custom_call.1} parent=1 // pred_check
      _
    $region3: #{tpu_custom_call.1} parent=1 // pred_check_branch
      %14 = sbr.rel (0) target = $region5
    $region4: #{tpu_custom_call.1} parent=1 // pred_region
      %16 = vsyncadd [#allocation3], 0
      %s18 = sshll.u32 %s0, 4
      %s19 = int_to_ptr.hbm [resolvable:$true] %s18
      %s20 = sshll.u32 [#allocation2], 4
      %s21 = int_to_ptr.vmem [resolvable:$true] %s20
      %23 = dma.hbm_to_vmem [thread:$0]  %s19, 128, %s21, [#allocation3]
    $region5: #{tpu_custom_call.1} parent=1 // pred_fallthru
      _
    // Predicated region
    $region6: #{tpu_custom_call.1} parent=1 // pred_check
      _
    $region7: #{tpu_custom_call.1} parent=1 // pred_check_branch
      %25 = sbr.rel (0) target = $region9
    $region8: #{tpu_custom_call.1} parent=1 // pred_region
      %27 = vsyncadd [#allocation6], 0
      %s28 = sshll.u32 %s1, 4
      %s29 = int_to_ptr.hbm [resolvable:$true] %s28
      %s30 = sshll.u32 [#allocation5], 4
      %s31 = int_to_ptr.vmem [resolvable:$true] %s30
      %36 = dma.hbm_to_vmem [thread:$0]  %s29, 256, %s31, [#allocation6], 128, 128, 8
    $region9: #{tpu_custom_call.1} parent=1 // pred_fallthru
      _
    // Predicated region
    $region10: #{tpu_custom_call.1} parent=1 // pred_check
      _
    $region11: #{tpu_custom_call.1} parent=1 // pred_check_branch
      %38 = sbr.rel (0) target = $region13
    $region12: #{tpu_custom_call.1} parent=1 // pred_region
      _
    $region13: #{tpu_custom_call.1} parent=1 // pred_fallthru
      _
    // Predicated region
    $region14: #{tpu_custom_call.1} parent=1 // pred_check
      _
    $region15: #{tpu_custom_call.1} parent=1 // pred_check_branch
      %40 = sbr.rel (0) target = $region17
    $region16: #{tpu_custom_call.1} parent=1 // pred_region
      %42 = vsyncadd [#allocation6], 0
      %s43 = sshll.u32 %s3, 4
      %s44 = int_to_ptr.hbm [resolvable:$true] %s43
      %s45 = sshll.u32 [#allocation7], 4
      %s46 = int_to_ptr.vmem [resolvable:$true] %s45
      %51 = dma.hbm_to_vmem [thread:$0]  %s44, 512, %s46, [#allocation6], 128, 128, 8
    $region17: #{tpu_custom_call.1} parent=1 // pred_fallthru
      _
    // Predicated region
    $region18: #{tpu_custom_call.1} parent=1 // pred_check
      _
    $region19: #{tpu_custom_call.1} parent=1 // pred_check_branch
      %53 = sbr.rel (0) target = $region21
    $region20: #{tpu_custom_call.1} parent=1 // pred_region
      _
    $region21: #{tpu_custom_call.1} parent=1 // pred_fallthru
      _
    // Predicated region
    $region22: #{tpu_custom_call.1} parent=1 // pred_check
      _
    $region23: #{tpu_custom_call.1} parent=1 // pred_check_branch
      %55 = sbr.rel (0) target = $region25
    $region24: #{tpu_custom_call.1} parent=1 // pred_region
      %57 = dma.done [#allocation3], 128
    $region25: #{tpu_custom_call.1} parent=1 // pred_fallthru
      _
    // Predicated region
    $region26: #{tpu_custom_call.1} parent=1 // pred_check
      _
    $region27: #{tpu_custom_call.1} parent=1 // pred_check_branch
      %59 = sbr.rel (0) target = $region29
    $region28: #{tpu_custom_call.1} parent=1 // pred_region
      %61 = dma.done [#allocation6], 256
    $region29: #{tpu_custom_call.1} parent=1 // pred_fallthru
      _
    // Predicated region
    $region30: #{tpu_custom_call.1} parent=1 // pred_check
      _
    $region31: #{tpu_custom_call.1} parent=1 // pred_check_branch
      %63 = sbr.rel (0) target = $region33
    $region32: #{tpu_custom_call.1} parent=1 // pred_region
      %65 = dma.done [#allocation6], 512
    $region33: #{tpu_custom_call.1} parent=1 // pred_fallthru
      _
    %v66 = vld [vmem:[#allocation2] sm:$0xff]
    %v67 = vld [vmem:[#allocation5] sm:$0xff]
    %v68 = vld [vmem:[#allocation5 + $0x8] sm:$0xff]
    %v69 = vld [vmem:[%s2] sm:$0x1]
    %v71 = vperm.slane %v69, 0
    %vm73 = vcmask 130048
    %v75 = vsel %vm73, %v66, 0
    %77 = vmatpush.msra.mxu0 0.0
    %78 = vmatpush.msra.mxu0 0.0
    %79 = vmatpush.msra.mxu0 0.0
    %80 = vmatpush.msra.mxu0 0.0
    %81 = vmatpush.msra.mxu0 0.0
    %82 = vmatpush.msra.mxu0 0.0
    %83 = vmatpush.msra.mxu0 0.0
    %84 = vmatpush.msra.mxu0 0.0
    %85 = vmatpush.msra.mxu0 0.0
    %86 = vmatpush.msra.mxu0 0.0
    %87 = vmatpush.msra.mxu0 0.0
    %88 = vmatpush.msra.mxu0 0.0
    %89 = vmatpush.msra.mxu0 0.0
    %90 = vmatpush.msra.mxu0 0.0
    %91 = vmatpush.msra.mxu0 %v68
    %92 = vmatpush.msra.mxu0 %v67
    %93 = vmatmul.f32.gmra.mxu0 %v75
    %v94 = vpop.f32.mrf.mxu0
    %v95 = vadd.f32 %v71, %v94
    %96 = vdwg.mxu0
    %v97 = vmax.f32 %v95, 0.0
    %v98 = vld [vmem:[#allocation7] sm:$0xff]
    %v99 = vld [vmem:[#allocation7 + $0x8] sm:$0xff]
    %v100 = vld [vmem:[#allocation7 + $0x10] sm:$0xff]
    %v101 = vld [vmem:[#allocation7 + $0x18] sm:$0xff]
    %v102 = vld [vmem:[%s4] sm:$0x1]
    %v104 = vperm.slane %v102, 0
    %vm106 = vcmask 261120
    %v108 = vsel %vm106, %v97, 0
    %110 = vmatpush.msra.mxu0 0.0
    %111 = vmatpush.msra.mxu0 0.0
    %112 = vmatpush.msra.mxu0 0.0
    %113 = vmatpush.msra.mxu0 0.0
    %114 = vmatpush.msra.mxu0 0.0
    %115 = vmatpush.msra.mxu0 0.0
    %116 = vmatpush.msra.mxu0 0.0
    %117 = vmatpush.msra.mxu0 0.0
    %118 = vmatpush.msra.mxu0 0.0
    %119 = vmatpush.msra.mxu0 0.0
    %120 = vmatpush.msra.mxu0 0.0
    %121 = vmatpush.msra.mxu0 0.0
    %122 = vmatpush.msra.mxu0 %v101
    %123 = vmatpush.msra.mxu0 %v100
    %124 = vmatpush.msra.mxu0 %v99
    %125 = vmatpush.msra.mxu0 %v98
    %126 = vmatmul.f32.gmra.mxu0 %v108
    %v127 = vpop.f32.mrf.mxu0
    %v128 = vadd.f32 %v104, %v127
    %129 = vdwg.mxu0
    %v130 = vtanh.pop %v128
    %v131 = vmul.f32 %v130, 2.0
    %vm132 = vcmp.gt.f32.partialorder %v128, 20.0
    %v133 = vmin.f32 %v128, 20.0
    %v134 = vmul.f32 %v133, 1.442695
    %v135 = vpow.pop %v134
    %v136 = vadd.f32 %v135, 1.0
    %v137 = vlog2.pop %v136
    %v138 = vmul.f32 %v137, 0.6931472
    %v139 = vmul.f32 -0.5, %v135
    %v140 = vadd.f32 %v139, 1.0
    %v141 = vmul.f32 %v140, %v135
    %v142 = vand.u32 2147483647, %v135
    %vm143 = vcmp.lt.f32.partialorder %v142, 0.0004427343
    %v144 = vsel %vm143, %v141, %v138
    %v145 = vsel %vm132, %v128, %v144
    %v146 = vlaneseq
    %v147 = vand.u32 %v146, 127
    %vm148 = vcmp.lt.s32.totalorder %v147, 8
    %v149 = vsel %vm148, %v131, %v145
    %150 = vst [vmem:[#allocation8] sm:$0xff] %v149
    // Predicated region
    $region34: #{tpu_custom_call.1} parent=1 // pred_check
      _
    $region35: #{tpu_custom_call.1} parent=1 // pred_check_branch
      %152 = sbr.rel (0) target = $region37
    $region36: #{tpu_custom_call.1} parent=1 // pred_region
      %154 = vsyncadd [#allocation4], 0
      %s156 = sshll.u32 [#allocation8], 4
      %s157 = int_to_ptr.vmem [resolvable:$true] %s156
      %s158 = sshll.u32 %s5, 4
      %s159 = int_to_ptr.hbm [resolvable:$true] %s158
      %161 = dma.vmem_to_hbm [thread:$0]  %s157, 128, %s159, [#allocation4]
    $region37: #{tpu_custom_call.1} parent=1 // pred_fallthru
      _
    // Predicated region
    $region38: #{tpu_custom_call.1} parent=1 // pred_check
      _
    $region39: #{tpu_custom_call.1} parent=1 // pred_check_branch
      %163 = sbr.rel (0) target = $region41
    $region40: #{tpu_custom_call.1} parent=1 // pred_region
      %165 = dma.done [#allocation4], 128
    $region41: #{tpu_custom_call.1} parent=1 // pred_fallthru
      _
    %166 = vsyncpa [#allocation3], 1
    %167 = vsyncpa [#allocation6], 1
    %168 = vsyncpa [#allocation4], 1

</llo_original>
